<compile_context>
chip_gen: v6e
topology: v6e:2x2x1
jax: 0.10.0
libtpu: 0.0.40
codegen_flags: <defaults>
</compile_context>

<pallas_src>
import jax
import jax.numpy as jnp
from jax.experimental import pallas as pl
from jax.experimental.pallas import tpu as pltpu


def _treat_linear_kernel(x_ref, w_ref, b_ref, out_ref):
    # x_ref  : (TN, 1+ind)    input tile, treatment column included
    # w_ref  : (1+ind, 1+outd) W_full (col 0 = pass-through e0)
    # b_ref  : (1, 1+outd)    bias_full = [0, bias]
    # out_ref: (TN, 1+outd)   [treatment | relu(linear)]
    acc = jnp.dot(x_ref[...], w_ref[...], preferred_element_type=jnp.float32)
    acc = acc + b_ref[...]
    # ReLU on every lane except lane 0 (the passed-through treatment value).
    col = jax.lax.broadcasted_iota(jnp.int32, acc.shape, dimension=1)
    out_ref[...] = jnp.where(col == 0, acc, jnp.maximum(acc, 0.0)).astype(out_ref.dtype)


def prepare_params(weight, treat_weight, bias):
    """One-time parameter prep (hoisted out of the per-call path)."""
    ind, outd = weight.shape
    w_aug = jnp.concatenate([treat_weight, weight], axis=0)            # (1+ind, outd)
    e0 = jnp.zeros((1 + ind, 1), weight.dtype).at[0, 0].set(1.0)        # treatment pass-through
    w_full = jnp.concatenate([e0, w_aug], axis=1)                       # (1+ind, 1+outd)
    bias_full = jnp.concatenate(
        [jnp.zeros((1,), bias.dtype), bias]).reshape(1, -1)              # (1, 1+outd)
    return w_full, bias_full


def _round_up(x, m):
    return ((x + m - 1) // m) * m


def _pick_tile(n, cap):
    """Batch tile: ~8 pipelined grid steps, rows a multiple of 8, capped."""
    if n <= 256:
        return n                       # single step; block == full array dim is legal
    tn = _round_up(pl.cdiv(n, 8), 8)   # aim for ~8 steps (>=4 per TC on v7x)
    return max(256, min(tn, cap))


def treat_linear_forward(x, w_full, bias_full, *, block_n=2048, min_pallas_rows=0):
    """x: (N, 1+ind) -> (N, 1+outd).  Shapes are static, so branching is trace-time."""
    n, k = x.shape                      # k = 1 + ind
    outd1 = w_full.shape[1]             # 1 + outd

    if n < min_pallas_rows:
        # Tiny-batch fast path: launch overhead dominates; let XLA fuse it.
        acc = jnp.dot(x, w_full, preferred_element_type=jnp.float32) + bias_full
        col = jax.lax.broadcasted_iota(jnp.int32, acc.shape, dimension=1)
        return jnp.where(col == 0, acc, jnp.maximum(acc, 0.0)).astype(x.dtype)

    tn = _pick_tile(n, block_n)
    itemsize = jnp.dtype(x.dtype).itemsize
    cost = pl.CostEstimate(
        flops=2 * n * k * outd1,
        transcendentals=0,
        bytes_accessed=(n * k + k * outd1 + outd1 + n * outd1) * itemsize,
    )

    return pl.pallas_call(
        _treat_linear_kernel,
        out_shape=jax.ShapeDtypeStruct((n, outd1), x.dtype),
        grid=(pl.cdiv(n, tn),),
        in_specs=[
            pl.BlockSpec((tn, k), lambda i: (i, 0)),         # x tile (moves with i)
            pl.BlockSpec((k, outd1), lambda i: (0, 0)),      # W_full (pinned)
            pl.BlockSpec((1, outd1), lambda i: (0, 0)),      # bias_full (pinned)
        ],
        out_specs=pl.BlockSpec((tn, outd1), lambda i: (i, 0)),
        compiler_params=pltpu.CompilerParams(
            dimension_semantics=("parallel",),               # shard batch across TCs
        ),
        cost_estimate=cost,
    )(x, w_full, bias_full)


def _reference(x, weight, treat_weight, bias):
    x_treat = x[:, 0:1]
    x_feature = x[:, 1:]
    out = x_feature @ weight + x_treat @ treat_weight + bias
    out = jnp.maximum(out, 0.0)
    return jnp.concatenate([x_treat, out], axis=1)


if __name__ == "__main__":
    # Module hyper-params (act='relu', istreat=1, isbias=1, islastlayer=0)
    ind, outd = 32, 32
    batch = 8

    key = jax.random.PRNGKey(0)
    kx, kw, kt, kb, kx2, kx3 = jax.random.split(key, 6)

    # deterministic parameter init, matching torch.rand -> U[0, 1)
    weight = jax.random.uniform(kw, (ind, outd), dtype=jnp.float32)
    treat_weight = jax.random.uniform(kt, (1, outd), dtype=jnp.float32)
    bias = jax.random.uniform(kb, (outd,), dtype=jnp.float32)

    # one-time parameter prep (outside the hot path)
    w_full, bias_full = prepare_params(weight, treat_weight, bias)

    fwd = jax.jit(treat_linear_forward)                    # Pallas path (default)
    fwd_fast = jax.jit(lambda a, b, c: treat_linear_forward(a, b, c, min_pallas_rows=256))

    def check(out, x):
        ref = _reference(x, weight, treat_weight, bias)
        assert out.shape == ref.shape, (out.shape, ref.shape)
        assert jnp.allclose(out, ref, atol=1e-5, rtol=1e-5), (
            float(jnp.max(jnp.abs(out - ref))))

    # small case through the Pallas kernel (single-block grid)
    x = jax.random.uniform(kx, (batch, 1 + ind), dtype=jnp.float32)
    check(jax.block_until_ready(fwd(x, w_full, bias_full)), x)

    # larger batch: multi-step pipelined grid (tn=256, 8 steps)
    x_big = jax.random.uniform(kx2, (2048, 1 + ind), dtype=jnp.float32)
    check(jax.block_until_ready(fwd(x_big, w_full, bias_full)), x_big)

    # non-multiple-of-tile batch: guards the partial-last-tile path
    x_odd = jax.random.uniform(kx3, (1000, 1 + ind), dtype=jnp.float32)
    check(jax.block_until_ready(fwd(x_odd, w_full, bias_full)), x_odd)

    # tiny-batch XLA fast path matches too
    check(jax.block_until_ready(fwd_fast(x, w_full, bias_full)), x)

    print("KERNEL_OK")
</pallas_src>

<mosaic_0001>
module attributes {stable_mosaic.version = 11 : i64} {
  func.func @_treat_linear_kernel(%arg0: i32, %arg1: memref<8x33xf32, #tpu.memory_space<vmem>>, %arg2: memref<33x33xf32, #tpu.memory_space<vmem>>, %arg3: memref<1x33xf32, #tpu.memory_space<vmem>>, %arg4: memref<8x33xf32, #tpu.memory_space<vmem>>) attributes {dimension_semantics = [#tpu.dimension_semantics<parallel>], iteration_bounds = array<i64: 1>, scalar_prefetch = 0 : i64, scratch_operands = 0 : i64, tpu.core_type = #tpu.core_type<tc>, window_params = [{transform_indices = @transform_0, window_bounds = array<i64: 8, 33>}, {pipeline_mode = #tpu.pipeline_mode<synchronous>, transform_indices = @transform_1, window_bounds = array<i64: 33, 33>}, {pipeline_mode = #tpu.pipeline_mode<synchronous>, transform_indices = @transform_2, window_bounds = array<i64: 1, 33>}, {transform_indices = @transform_3, window_bounds = array<i64: 8, 33>}]} {
    %c0 = arith.constant 0 : index
    %c0_0 = arith.constant 0 : index
    %0 = vector.load %arg1[%c0, %c0_0] : memref<8x33xf32, #tpu.memory_space<vmem>>, vector<8x33xf32>
    %c0_1 = arith.constant 0 : index
    %c0_2 = arith.constant 0 : index
    %1 = vector.load %arg2[%c0_1, %c0_2] : memref<33x33xf32, #tpu.memory_space<vmem>>, vector<33x33xf32>
    %cst = arith.constant dense<0.000000e+00> : vector<8x33xf32>
    %2 = tpu.matmul %0, %1, %cst {dimension_numbers = #tpu.dot_dimension_numbers<[1], [0], [0], [1], [0, 0, 1, 1], [], []>} : vector<8x33xf32>, vector<33x33xf32>, vector<8x33xf32> -> vector<8x33xf32>
    %c0_3 = arith.constant 0 : index
    %c0_4 = arith.constant 0 : index
    %3 = vector.load %arg3[%c0_3, %c0_4] : memref<1x33xf32, #tpu.memory_space<vmem>>, vector<1x33xf32>
    %4 = vector.broadcast %3 : vector<1x33xf32> to vector<8x33xf32>
    %5 = arith.addf %2, %4 : vector<8x33xf32>
    %6 = tpu.iota {dimensions = array<i32: 1>} : vector<8x33xi32>
    %c0_i32 = arith.constant 0 : i32
    %7 = vector.broadcast %c0_i32 : i32 to vector<8x33xi32>
    %8 = arith.cmpi eq, %6, %7 : vector<8x33xi32>
    %cst_5 = arith.constant 0.000000e+00 : f32
    %9 = vector.broadcast %cst_5 : f32 to vector<8x33xf32>
    %10 = arith.maximumf %5, %9 : vector<8x33xf32>
    %11 = arith.select %8, %5, %10 : vector<8x33xi1>, vector<8x33xf32>
    %c0_6 = arith.constant 0 : index
    %c0_7 = arith.constant 0 : index
    %12 = vector.load %arg4[%c0_6, %c0_7] : memref<8x33xf32, #tpu.memory_space<vmem>>, vector<8x33xf32>
    tpu.vector_store %arg4[%c0_6, %c0_7], %11 {strides = array<i32>} : memref<8x33xf32, #tpu.memory_space<vmem>>, vector<8x33xf32>,
    return
  }
  func.func @transform_0(%arg0: i32) -> (i32, i32) {
    %c0_i32 = arith.constant 0 : i32
    %c0_i32_0 = arith.constant 0 : i32
    return %arg0, %c0_i32 : i32, i32
  }
  func.func @transform_1(%arg0: i32) -> (i32, i32) {
    %c0_i32 = arith.constant 0 : i32
    %c0_i32_0 = arith.constant 0 : i32
    %c0_i32_1 = arith.constant 0 : i32
    return %c0_i32, %c0_i32_0 : i32, i32
  }
  func.func @transform_2(%arg0: i32) -> (i32, i32) {
    %c0_i32 = arith.constant 0 : i32
    %c0_i32_0 = arith.constant 0 : i32
    %c0_i32_1 = arith.constant 0 : i32
    return %c0_i32, %c0_i32_0 : i32, i32
  }
  func.func @transform_3(%arg0: i32) -> (i32, i32) {
    %c0_i32 = arith.constant 0 : i32
    %c0_i32_0 = arith.constant 0 : i32
    return %arg0, %c0_i32 : i32, i32
  }
}

</mosaic_0001>

<llo_original>
// kernel: treat_linear_forward.1
$region0: #{treat_linear_forward.1}
  #allocation0 [shape = 'u32[]', space=smem, size = 0x4, offset = 0x4, fixed_abs, tag = 'smem constant byte address 0x4 - core index']
  #allocation1 [shape = 'u32[144,128]{1,0:T(1,128)}', space=vmem, size = 0x12000, scoped, tag = 'internal scratch']
  %s0 = inlined_call_operand.hbm [shape: f32[8,33], index: 0, kind: input, shape index: {}]
  %s1 = inlined_call_operand.hbm [shape: f32[33,33], index: 1, kind: input, shape index: {}]
  %s2 = inlined_call_operand.vmem [shape: f32[1,33], index: 2, kind: input, shape index: {}]
  %s3 = inlined_call_operand.hbm [shape: f32[8,33], index: 3, kind: output, shape index: {}]
  %s4 = sld [smem:[#allocation0]]
  $region30: #{treat_linear_forward.1} parent=0
    _
  %s6 = ssub.s32 1, %s4
  %s7 = scalar_select 0, %s6, %s4
  $region1: #{treat_linear_forward.1} parent=0
    #allocation2 [shape = 'u8[4096]{0}', space=vmem, size = 0x1000, scoped, tag = 'input window, operand 0, single buffered']
    #allocation3 [shape = 's32[1]{0}', space=sflag, size = 0x4, scoped, tag = 'scoped memory for treat_linear_forward.1']
    #allocation4 [shape = 's32[1]{0}', space=sflag, size = 0x4, scoped, tag = 'scoped memory for treat_linear_forward.1']
    #allocation5 [shape = 'u8[20480]{0}', space=vmem, size = 0x5000, scoped, tag = 'input window, operand 1, single buffered']
    #allocation6 [shape = 's32[1]{0}', space=sflag, size = 0x4, scoped, tag = 'scoped memory for treat_linear_forward.1']
    #allocation7 [shape = 'u8[4096]{0}', space=vmem, size = 0x1000, scoped, tag = 'output window, operand 0, single buffered']
    %8 = vsyncpa [#allocation3], 0
    %9 = vsyncpa [#allocation6], 0
    %10 = vsyncpa [#allocation4], 0
    // Predicated region
    $region2: #{treat_linear_forward.1} parent=1 // pred_check
      _
    $region3: #{treat_linear_forward.1} parent=1 // pred_check_branch
      %12 = sbr.rel (0) target = $region5
    $region4: #{treat_linear_forward.1} parent=1 // pred_region
      %s14 = ssub.s32 128, 128
      %15 = vsyncadd [#allocation3], %s14
      %s17 = sshll.u32 [#allocation2], 4
      %s18 = int_to_ptr.vmem [resolvable:$true] %s17
      %20 = dma.hbm_to_vmem [thread:$0]  %s0, 128, %s18, [#allocation3]
    $region5: #{treat_linear_forward.1} parent=1 // pred_fallthru
      _
    // Predicated region
    $region6: #{treat_linear_forward.1} parent=1 // pred_check
      _
    $region7: #{treat_linear_forward.1} parent=1 // pred_check_branch
      %22 = sbr.rel (0) target = $region9
    $region8: #{treat_linear_forward.1} parent=1 // pred_region
      %s24 = ssub.s32 640, 640
      %25 = vsyncadd [#allocation6], %s24
      %s26 = sshll.u32 [#allocation5], 4
      %s27 = int_to_ptr.vmem [resolvable:$true] %s26
      %32 = dma.hbm_to_vmem [thread:$0]  %s1, 640, %s27, [#allocation6], 128, 128, 8
    $region9: #{treat_linear_forward.1} parent=1 // pred_fallthru
      _
    // Predicated region
    $region10: #{treat_linear_forward.1} parent=1 // pred_check
      _
    $region11: #{treat_linear_forward.1} parent=1 // pred_check_branch
      %34 = sbr.rel (0) target = $region13
    $region12: #{treat_linear_forward.1} parent=1 // pred_region
      _
    $region13: #{treat_linear_forward.1} parent=1 // pred_fallthru
      _
    // Predicated region
    $region14: #{treat_linear_forward.1} parent=1 // pred_check
      _
    $region15: #{treat_linear_forward.1} parent=1 // pred_check_branch
      %36 = sbr.rel (0) target = $region17
    $region16: #{treat_linear_forward.1} parent=1 // pred_region
      %37 = dma.done [#allocation3], 128
    $region17: #{treat_linear_forward.1} parent=1 // pred_fallthru
      _
    // Predicated region
    $region18: #{treat_linear_forward.1} parent=1 // pred_check
      _
    $region19: #{treat_linear_forward.1} parent=1 // pred_check_branch
      %39 = sbr.rel (0) target = $region21
    $region20: #{treat_linear_forward.1} parent=1 // pred_region
      %40 = dma.done [#allocation6], 640
    $region21: #{treat_linear_forward.1} parent=1 // pred_fallthru
      _
    %v41 = vld [vmem:[#allocation2] sm:$0xff]
    %v42 = vld [vmem:[#allocation5] sm:$0xff]
    %v43 = vld [vmem:[#allocation5 + $0x8] sm:$0xff]
    %v44 = vld [vmem:[#allocation5 + $0x10] sm:$0xff]
    %v45 = vld [vmem:[#allocation5 + $0x18] sm:$0xff]
    %v46 = vld [vmem:[#allocation5 + $0x20] sm:$0x1]
    %v47 = vld [vmem:[%s2] sm:$0x1]
    %v49 = vlaneseq
    %v50 = vshrl.u32 %v49, 7
    %v51 = vsub.s32 0, %v50
    %v52 = vrot.slane %v47, %v51
    %vm54 = vcmask 269312
    %v56 = vsel %vm54, %v41, 0
    %vm58 = vcmask 1040384
    %v60 = vsel %vm58, %v46, 0
    %62 = vmatprep.subr.mxu0 0.0
    %63 = vmatpush1.msra.mxu0 0.0
    %64 = vmatprep.subr.mxu0 0.0
    %65 = vmatpush1.msra.mxu0 0.0
    %66 = vmatprep.subr.mxu0 0.0
    %67 = vmatpush1.msra.mxu0 0.0
    %68 = vmatprep.subr.mxu0 0.0
    %69 = vmatpush1.msra.mxu0 0.0
    %70 = vmatprep.subr.mxu0 0.0
    %71 = vmatpush1.msra.mxu0 0.0
    %72 = vmatprep.subr.mxu0 0.0
    %73 = vmatpush1.msra.mxu0 0.0
    %74 = vmatprep.subr.mxu0 0.0
    %75 = vmatpush1.msra.mxu0 0.0
    %76 = vmatprep.subr.mxu0 0.0
    %77 = vmatpush1.msra.mxu0 0.0
    %78 = vmatprep.subr.mxu0 0.0
    %79 = vmatpush1.msra.mxu0 0.0
    %80 = vmatprep.subr.mxu0 0.0
    %81 = vmatpush1.msra.mxu0 0.0
    %82 = vmatprep.subr.mxu0 0.0
    %83 = vmatpush1.msra.mxu0 0.0
    %84 = vmatprep.subr.mxu0 0.0
    %85 = vmatpush1.msra.mxu0 %v60
    %86 = vmatprep.subr.mxu0 0.0
    %87 = vmatpush1.msra.mxu0 %v45
    %88 = vmatprep.subr.mxu0 0.0
    %89 = vmatpush1.msra.mxu0 %v44
    %90 = vmatprep.subr.mxu0 0.0
    %91 = vmatpush1.msra.mxu0 %v43
    %92 = vmatprep.subr.mxu0 0.0
    %93 = vmatpush1.msra.mxu0 %v42
    %94 = vmatprep.subr.mxu0 0.0
    %95 = vmatpush2.msra.mxu0 0.0
    %96 = vmatprep.subr.mxu0 0.0
    %97 = vmatpush2.msra.mxu0 0.0
    %98 = vmatprep.subr.mxu0 0.0
    %99 = vmatpush2.msra.mxu0 0.0
    %100 = vmatprep.subr.mxu0 0.0
    %101 = vmatpush2.msra.mxu0 0.0
    %102 = vmatprep.subr.mxu0 0.0
    %103 = vmatpush2.msra.mxu0 0.0
    %104 = vmatprep.subr.mxu0 0.0
    %105 = vmatpush2.msra.mxu0 0.0
    %106 = vmatprep.subr.mxu0 0.0
    %107 = vmatpush2.msra.mxu0 0.0
    %108 = vmatprep.subr.mxu0 0.0
    %109 = vmatpush2.msra.mxu0 0.0
    %110 = vmatprep.subr.mxu0 0.0
    %111 = vmatpush2.msra.mxu0 0.0
    %112 = vmatprep.subr.mxu0 0.0
    %113 = vmatpush2.msra.mxu0 0.0
    %114 = vmatprep.subr.mxu0 0.0
    %115 = vmatpush2.msra.mxu0 0.0
    %116 = vmatprep.subr.mxu0 0.0
    %117 = vmatpush2.msra.mxu0 0.0
    %118 = vmatprep.subr.mxu0 0.0
    %119 = vmatpush2.msra.mxu0 0.0
    %120 = vmatprep.subr.mxu0 0.0
    %121 = vmatpush2.msra.mxu0 0.0
    %122 = vmatprep.subr.mxu0 0.0
    %123 = vmatpush2.msra.mxu0 0.0
    %124 = vmatprep.subr.mxu0 0.0
    %125 = vmatpush2.msra.mxu0 0.0
    %126 = vmatprep.mubr.f32.mxu0 0.0
    %127 = vmatmul.mubr.f32.gmra.mxu0 %v56
    %v128 = vpop.f32.mrf.mxu0
    %v129 = vadd.f32 %v52, %v128
    %v130 = vpop.f32.mrf.mxu0
    %131 = vdwg.mxu0
    %v132 = vlaneseq
    %v133 = vand.u32 %v132, 127
    %vm134 = vcmp.eq.s32.totalorder %v133, 0
    %v135 = vmax.f32 %v129, 0.0
    %v136 = vsel %vm134, %v129, %v135
    %137 = vst.msk [vmem:[#allocation7] sm:$0xff] %vm54, %v136
    // Predicated region
    $region22: #{treat_linear_forward.1} parent=1 // pred_check
      _
    $region23: #{treat_linear_forward.1} parent=1 // pred_check_branch
      %139 = sbr.rel (0) target = $region25
    $region24: #{treat_linear_forward.1} parent=1 // pred_region
      %s141 = ssub.s32 128, 128
      %142 = vsyncadd [#allocation4], %s141
      %s144 = sshll.u32 [#allocation7], 4
      %s145 = int_to_ptr.vmem [resolvable:$true] %s144
      %147 = dma.vmem_to_hbm [thread:$0]  %s145, 128, %s3, [#allocation4]
    $region25: #{treat_linear_forward.1} parent=1 // pred_fallthru
      _
    // Predicated region
    $region26: #{treat_linear_forward.1} parent=1 // pred_check
      _
    $region27: #{treat_linear_forward.1} parent=1 // pred_check_branch
      %149 = sbr.rel (0) target = $region29
    $region28: #{treat_linear_forward.1} parent=1 // pred_region
      %150 = dma.done [#allocation4], 128
    $region29: #{treat_linear_forward.1} parent=1 // pred_fallthru
      _
    %151 = vsyncpa [#allocation3], 1
    %152 = vsyncpa [#allocation6], 1
    %153 = vsyncpa [#allocation4], 1

</llo_original>
